<compile_context>
chip_gen: v7x
topology: tpu7x:2x2x1
jax: 0.10.0
libtpu: 0.0.40
codegen_flags: <defaults>
</compile_context>

<pallas_src>
import numpy as np
import jax
import jax.numpy as jnp
from jax.experimental import pallas as pl
from jax.experimental.pallas import tpu as pltpu


def _round_up(n, m):
    return ((n + m - 1) // m) * m


def _linear_kernel(x_ref, w_ref, b_ref, o_ref):
    # x_ref: [B, Fp] f32, w_ref: [Fp, Ap] f32, b_ref: [1, Ap] f32, o_ref: [B, Ap] f32
    acc = jnp.dot(x_ref[...], w_ref[...], preferred_element_type=jnp.float32)
    o_ref[...] = acc + b_ref[...]


def _linear_pallas(x_p, w_p, b_p):
    """y_p = x_p @ w_p + b_p, all operands already padded/laid out for VMEM."""
    B, Fp = x_p.shape
    Fp2, Ap = w_p.shape
    assert Fp == Fp2 and b_p.shape == (1, Ap)

    cost = pl.CostEstimate(
        flops=2 * B * Fp * Ap,
        transcendentals=0,
        bytes_accessed=4 * (B * Fp + Fp * Ap + Ap + B * Ap),
    )

    return pl.pallas_call(
        _linear_kernel,
        out_shape=jax.ShapeDtypeStruct((B, Ap), jnp.float32),
        in_specs=[
            pl.BlockSpec(memory_space=pltpu.MemorySpace.VMEM),
            pl.BlockSpec(memory_space=pltpu.MemorySpace.VMEM),
            pl.BlockSpec(memory_space=pltpu.MemorySpace.VMEM),
        ],
        out_specs=pl.BlockSpec(memory_space=pltpu.MemorySpace.VMEM),
        cost_estimate=cost,
    )(x_p, w_p, b_p)


def make_chess_nn_forward(w_torch_layout, bias):
    """Build a jitted forward for ChessNN's single Linear layer.

    w_torch_layout: [A, F] float32 (torch nn.Linear weight layout)
    bias:           [A]    float32
    Returns forward(x: [B, F] f32) -> [B, A] f32  ==  x @ W^T + b.

    All weight prep (transpose, f32, padding the action axis to a 128-lane
    multiple) happens once here, not on the per-call hot path.
    """
    A, F = w_torch_layout.shape
    assert bias.shape == (A,)
    Fp = _round_up(F, 128)
    Ap = _round_up(A, 128)

    w_p = jnp.pad(
        jnp.asarray(w_torch_layout, jnp.float32).T, ((0, Fp - F), (0, Ap - A))
    )  # [Fp, Ap], zero-padded rows/lanes -> padded output lanes are exactly b-pad (=0)
    b_p = jnp.pad(
        jnp.asarray(bias, jnp.float32).reshape(1, A), ((0, 0), (0, Ap - A))
    )  # [1, Ap]

    @jax.jit
    def forward(x):
        B, Fx = x.shape
        assert Fx == F, f"expected {F} features, got {Fx}"
        x_p = x.astype(jnp.float32)
        if F != Fp:  # F=128 here, so this pad is skipped entirely (no extra HLO)
            x_p = jnp.pad(x_p, ((0, 0), (0, Fp - F)))
        y_p = _linear_pallas(x_p, w_p, b_p)
        # TODO(synk): if the downstream consumer tolerates padded action lanes
        # (e.g. argmax with -inf bias padding), return y_p directly and drop
        # this slice.
        return y_p[:, :A]

    return forward


def reference_forward(x, w_torch_layout, bias):
    return x @ w_torch_layout.T + bias[None, :]


if __name__ == "__main__":
    # Small shapes consistent with the module: a chess-like board state.
    # input_shape = (2, 8, 8) -> prod = 128 features; num_actions = 64; batch = 2.
    input_shape = (2, 8, 8)
    num_actions = 64
    batch = 2
    in_features = int(np.prod(input_shape))

    key = jax.random.PRNGKey(0)
    kx, kw, kb = jax.random.split(key, 3)

    # Deterministic synthetic parameters in nn.Linear's layout: W [A, F], b [A].
    bound = 1.0 / np.sqrt(in_features)
    w_torch_layout = jax.random.uniform(
        kw, (num_actions, in_features), jnp.float32, minval=-bound, maxval=bound
    )
    b = jax.random.uniform(
        kb, (num_actions,), jnp.float32, minval=-bound, maxval=bound
    )

    # Model init: one-time weight prep + jitted forward.
    forward = make_chess_nn_forward(w_torch_layout, b)

    # Input: board states, flattened as the module's act() does.
    x_raw = jax.random.normal(kx, (batch,) + input_shape, jnp.float32)
    x = x_raw.reshape(batch, in_features)

    y = jax.block_until_ready(forward(x))

    y_ref = reference_forward(x, w_torch_layout, b)
    # f32 end-to-end (f32 MXU accumulation): tight tolerance vs the fp32 reference.
    np.testing.assert_allclose(np.asarray(y), np.asarray(y_ref), rtol=1e-4, atol=1e-4)

    print("KERNEL_OK")
</pallas_src>

<mosaic_0001>
module attributes {stable_mosaic.version = 11 : i64} {
  func.func @_linear_kernel(%arg0: memref<2x128xf32, #tpu.memory_space<vmem>>, %arg1: memref<128x128xf32, #tpu.memory_space<vmem>>, %arg2: memref<1x128xf32, #tpu.memory_space<vmem>>, %arg3: memref<2x128xf32, #tpu.memory_space<vmem>>) attributes {dimension_semantics = [], scalar_prefetch = 0 : i64, scratch_operands = 0 : i64, tpu.core_type = #tpu.core_type<tc>} {
    %c0 = arith.constant 0 : index
    %c0_0 = arith.constant 0 : index
    %0 = vector.load %arg0[%c0, %c0_0] : memref<2x128xf32, #tpu.memory_space<vmem>>, vector<2x128xf32>
    %c0_1 = arith.constant 0 : index
    %c0_2 = arith.constant 0 : index
    %1 = vector.load %arg1[%c0_1, %c0_2] : memref<128x128xf32, #tpu.memory_space<vmem>>, vector<128x128xf32>
    %cst = arith.constant dense<0.000000e+00> : vector<2x128xf32>
    %2 = tpu.matmul %0, %1, %cst {dimension_numbers = #tpu.dot_dimension_numbers<[1], [0], [0], [1], [0, 0, 1, 1], [], []>} : vector<2x128xf32>, vector<128x128xf32>, vector<2x128xf32> -> vector<2x128xf32>
    %c0_3 = arith.constant 0 : index
    %c0_4 = arith.constant 0 : index
    %3 = vector.load %arg2[%c0_3, %c0_4] : memref<1x128xf32, #tpu.memory_space<vmem>>, vector<1x128xf32>
    %4 = vector.broadcast %3 : vector<1x128xf32> to vector<2x128xf32>
    %5 = arith.addf %2, %4 : vector<2x128xf32>
    %c0_5 = arith.constant 0 : index
    %c0_6 = arith.constant 0 : index
    %6 = vector.load %arg3[%c0_5, %c0_6] : memref<2x128xf32, #tpu.memory_space<vmem>>, vector<2x128xf32>
    tpu.vector_store %arg3[%c0_5, %c0_6], %5 {strides = array<i32>} : memref<2x128xf32, #tpu.memory_space<vmem>>, vector<2x128xf32>,
    return
  }
}

</mosaic_0001>

<llo_original>
// kernel: forward.1
$region0: #{forward.1}
  #allocation0 [shape = 'u32[]', space=smem, size = 0x4, offset = 0x4, fixed_abs, tag = 'smem constant byte address 0x4 - core index']
  #allocation1 [shape = 'u32[144,128]{1,0:T(1,128)}', space=vmem, size = 0x12000, scoped, tag = 'internal scratch']
  %s0 = inlined_call_operand.hbm [shape: f32[2,128], index: 0, kind: input, shape index: {}]
  %s1 = inlined_call_operand.hbm [shape: f32[128,128], index: 1, kind: input, shape index: {}]
  %s2 = inlined_call_operand.vmem [shape: f32[1,128], index: 2, kind: input, shape index: {}]
  %s3 = inlined_call_operand.hbm [shape: f32[2,128], index: 3, kind: output, shape index: {}]
  %s4 = sld [smem:[#allocation0]]
  $region30: #{forward.1} parent=0
    _
  %s6 = ssub.s32 1, %s4
  %s7 = scalar_select 0, %s6, %s4
  $region1: #{forward.1} parent=0
    #allocation2 [shape = 'u8[1024]{0}', space=vmem, size = 0x400, scoped, tag = 'input window, operand 0, single buffered']
    #allocation3 [shape = 's32[1]{0}', space=sflag, size = 0x4, scoped, tag = 'scoped memory for forward.1']
    #allocation4 [shape = 's32[1]{0}', space=sflag, size = 0x4, scoped, tag = 'scoped memory for forward.1']
    #allocation5 [shape = 'u8[65536]{0}', space=vmem, size = 0x10000, scoped, tag = 'input window, operand 1, single buffered']
    #allocation6 [shape = 's32[1]{0}', space=sflag, size = 0x4, scoped, tag = 'scoped memory for forward.1']
    #allocation7 [shape = 'u8[1024]{0}', space=vmem, size = 0x400, scoped, tag = 'output window, operand 0, single buffered']
    %8 = vsyncpa [#allocation3], 0
    %9 = vsyncpa [#allocation6], 0
    %10 = vsyncpa [#allocation4], 0
    // Predicated region
    $region2: #{forward.1} parent=1 // pred_check
      _
    $region3: #{forward.1} parent=1 // pred_check_branch
      %12 = sbr.rel (0) target = $region5
    $region4: #{forward.1} parent=1 // pred_region
      %s14 = ssub.s32 32, 32
      %15 = vsyncadd [#allocation3], %s14
      %s17 = sshll.u32 [#allocation2], 4
      %s18 = int_to_ptr.vmem [resolvable:$true] %s17
      %20 = dma.hbm_to_vmem [thread:$0]  %s0, 32, %s18, [#allocation3]
    $region5: #{forward.1} parent=1 // pred_fallthru
      _
    // Predicated region
    $region6: #{forward.1} parent=1 // pred_check
      _
    $region7: #{forward.1} parent=1 // pred_check_branch
      %22 = sbr.rel (0) target = $region9
    $region8: #{forward.1} parent=1 // pred_region
      %s24 = ssub.s32 2048, 2048
      %25 = vsyncadd [#allocation6], %s24
      %s26 = sshll.u32 [#allocation5], 4
      %s27 = int_to_ptr.vmem [resolvable:$true] %s26
      %32 = dma.hbm_to_vmem [thread:$0]  %s1, 2048, %s27, [#allocation6], 128, 128, 8
    $region9: #{forward.1} parent=1 // pred_fallthru
      _
    // Predicated region
    $region10: #{forward.1} parent=1 // pred_check
      _
    $region11: #{forward.1} parent=1 // pred_check_branch
      %34 = sbr.rel (0) target = $region13
    $region12: #{forward.1} parent=1 // pred_region
      _
    $region13: #{forward.1} parent=1 // pred_fallthru
      _
    // Predicated region
    $region14: #{forward.1} parent=1 // pred_check
      _
    $region15: #{forward.1} parent=1 // pred_check_branch
      %36 = sbr.rel (0) target = $region17
    $region16: #{forward.1} parent=1 // pred_region
      %37 = dma.done [#allocation3], 32
    $region17: #{forward.1} parent=1 // pred_fallthru
      _
    // Predicated region
    $region18: #{forward.1} parent=1 // pred_check
      _
    $region19: #{forward.1} parent=1 // pred_check_branch
      %39 = sbr.rel (0) target = $region21
    $region20: #{forward.1} parent=1 // pred_region
      %40 = dma.done [#allocation6], 2048
    $region21: #{forward.1} parent=1 // pred_fallthru
      _
    %v41 = vld [vmem:[#allocation2] sm:$0x3]
    %v42 = vld [vmem:[#allocation5] sm:$0xff]
    %v43 = vld [vmem:[#allocation5 + $0x8] sm:$0xff]
    %v44 = vld [vmem:[#allocation5 + $0x10] sm:$0xff]
    %v45 = vld [vmem:[#allocation5 + $0x18] sm:$0xff]
    %v46 = vld [vmem:[#allocation5 + $0x20] sm:$0xff]
    %v47 = vld [vmem:[#allocation5 + $0x28] sm:$0xff]
    %v48 = vld [vmem:[#allocation5 + $0x30] sm:$0xff]
    %v49 = vld [vmem:[#allocation5 + $0x38] sm:$0xff]
    %v50 = vld [vmem:[#allocation5 + $0x40] sm:$0xff]
    %v51 = vld [vmem:[#allocation5 + $0x48] sm:$0xff]
    %v52 = vld [vmem:[#allocation5 + $0x50] sm:$0xff]
    %v53 = vld [vmem:[#allocation5 + $0x58] sm:$0xff]
    %v54 = vld [vmem:[#allocation5 + $0x60] sm:$0xff]
    %v55 = vld [vmem:[#allocation5 + $0x68] sm:$0xff]
    %v56 = vld [vmem:[#allocation5 + $0x70] sm:$0xff]
    %v57 = vld [vmem:[#allocation5 + $0x78] sm:$0xff]
    %v58 = vld [vmem:[%s2] sm:$0x1]
    %v60 = vlaneseq
    %v61 = vshrl.u32 %v60, 7
    %v62 = vsub.s32 0, %v61
    %v63 = vrot.slane %v58, %v62
    %65 = vmatprep.subr.mxu0 0.0
    %66 = vmatpush1.msra.mxu0 %v42
    %67 = vmatprep.subr.mxu0 0.0
    %68 = vmatpush1.msra.mxu0 %v43
    %69 = vmatprep.subr.mxu0 0.0
    %70 = vmatpush1.msra.mxu0 %v44
    %71 = vmatprep.subr.mxu0 0.0
    %72 = vmatpush1.msra.mxu0 %v45
    %73 = vmatprep.subr.mxu0 0.0
    %74 = vmatpush1.msra.mxu0 %v46
    %75 = vmatprep.subr.mxu0 0.0
    %76 = vmatpush1.msra.mxu0 %v47
    %77 = vmatprep.subr.mxu0 0.0
    %78 = vmatpush1.msra.mxu0 %v48
    %79 = vmatprep.subr.mxu0 0.0
    %80 = vmatpush1.msra.mxu0 %v49
    %81 = vmatprep.subr.mxu0 0.0
    %82 = vmatpush1.msra.mxu0 %v50
    %83 = vmatprep.subr.mxu0 0.0
    %84 = vmatpush1.msra.mxu0 %v51
    %85 = vmatprep.subr.mxu0 0.0
    %86 = vmatpush1.msra.mxu0 %v52
    %87 = vmatprep.subr.mxu0 0.0
    %88 = vmatpush1.msra.mxu0 %v53
    %89 = vmatprep.subr.mxu0 0.0
    %90 = vmatpush1.msra.mxu0 %v54
    %91 = vmatprep.subr.mxu0 0.0
    %92 = vmatpush1.msra.mxu0 %v55
    %93 = vmatprep.subr.mxu0 0.0
    %94 = vmatpush1.msra.mxu0 %v56
    %95 = vmatprep.subr.mxu0 0.0
    %96 = vmatpush1.msra.mxu0 %v57
    %97 = vmatprep.subr.mxu0 0.0
    %98 = vmatpush1.msra.mxu0 0.0
    %99 = vmatprep.subr.mxu0 0.0
    %100 = vmatpush1.msra.mxu0 0.0
    %101 = vmatprep.subr.mxu0 0.0
    %102 = vmatpush1.msra.mxu0 0.0
    %103 = vmatprep.subr.mxu0 0.0
    %104 = vmatpush1.msra.mxu0 0.0
    %105 = vmatprep.subr.mxu0 0.0
    %106 = vmatpush1.msra.mxu0 0.0
    %107 = vmatprep.subr.mxu0 0.0
    %108 = vmatpush1.msra.mxu0 0.0
    %109 = vmatprep.subr.mxu0 0.0
    %110 = vmatpush1.msra.mxu0 0.0
    %111 = vmatprep.subr.mxu0 0.0
    %112 = vmatpush1.msra.mxu0 0.0
    %113 = vmatprep.subr.mxu0 0.0
    %114 = vmatpush1.msra.mxu0 0.0
    %115 = vmatprep.subr.mxu0 0.0
    %116 = vmatpush1.msra.mxu0 0.0
    %117 = vmatprep.subr.mxu0 0.0
    %118 = vmatpush1.msra.mxu0 0.0
    %119 = vmatprep.subr.mxu0 0.0
    %120 = vmatpush1.msra.mxu0 0.0
    %121 = vmatprep.subr.mxu0 0.0
    %122 = vmatpush1.msra.mxu0 0.0
    %123 = vmatprep.subr.mxu0 0.0
    %124 = vmatpush1.msra.mxu0 0.0
    %125 = vmatprep.subr.mxu0 0.0
    %126 = vmatpush1.msra.mxu0 0.0
    %127 = vmatprep.subr.mxu0 0.0
    %128 = vmatpush1.msra.mxu0 0.0
    %129 = vmatprep.mubr.f32.mxu0 0.0
    %130 = vmatmul.mubr.f32.gmra.mrb[0].mxu0 %v41
    %v131 = vpop.f32.mrb[0].mxu0
    %v132 = vadd.f32 %v63, %v131
    %v133 = vpop.f32.mrb[0].mxu0
    %134 = vdwg.mxu0
    %135 = vst [vmem:[#allocation7] sm:$0x3] %v132
    // Predicated region
    $region22: #{forward.1} parent=1 // pred_check
      _
    $region23: #{forward.1} parent=1 // pred_check_branch
      %137 = sbr.rel (0) target = $region25
    $region24: #{forward.1} parent=1 // pred_region
      %s139 = ssub.s32 32, 32
      %140 = vsyncadd [#allocation4], %s139
      %s142 = sshll.u32 [#allocation7], 4
      %s143 = int_to_ptr.vmem [resolvable:$true] %s142
      %145 = dma.vmem_to_hbm [thread:$0]  %s143, 32, %s3, [#allocation4]
    $region25: #{forward.1} parent=1 // pred_fallthru
      _
    // Predicated region
    $region26: #{forward.1} parent=1 // pred_check
      _
    $region27: #{forward.1} parent=1 // pred_check_branch
      %147 = sbr.rel (0) target = $region29
    $region28: #{forward.1} parent=1 // pred_region
      %148 = dma.done [#allocation4], 32
    $region29: #{forward.1} parent=1 // pred_fallthru
      _
    %149 = vsyncpa [#allocation3], 1
    %150 = vsyncpa [#allocation6], 1
    %151 = vsyncpa [#allocation4], 1

</llo_original>
